<compile_context>
chip_gen: v5e
topology: v5e:2x2
jax: 0.10.0
libtpu: 0.0.40
codegen_flags: <defaults>
</compile_context>

<pallas_src>
import jax
import jax.numpy as jnp
from jax import lax
from jax.experimental import pallas as pl
from jax.experimental.pallas import tpu as pltpu

_LANES = 128
_SUBL = 8
_NATIVE = _LANES * _SUBL            # 1024 elements per native (8,128) slab
_MAX_TB = 1024                      # <= 4 MiB f32 per input block (v7x-safe)
_BLOCK_BYTE_BUDGET = 24 << 20       # target for double-buffered input blocks


def _make_dice_kernel(tb, n_slabs, has_weights, needs_mask):
    """Per-tile partial-reduction kernel factory.

    Input blocks are (tb, 8, 128) slabs of prediction / gt / mask [/ weights]
    in their native HBM dtype; the output block is (1, 3, 8, 128) f32 partial
    sums (intersection, sum(p*m), sum(g*m)) for this tile.
    """

    def kernel(*refs):
        if has_weights:
            p_ref, g_ref, m_ref, w_ref, out_ref = refs
        else:
            p_ref, g_ref, m_ref, out_ref = refs
            w_ref = None

        # Valid slabs remaining for this tile (only the last tile is ragged).
        n_valid = n_slabs - pl.program_id(0) * tb if needs_mask else None

        def body(i, carry):
            acc_i, acc_p, acc_g = carry
            p = p_ref[i].astype(jnp.float32)
            g = g_ref[i].astype(jnp.float32)
            m = m_ref[i].astype(jnp.float32)
            if has_weights:
                m = m * w_ref[i].astype(jnp.float32)
            if needs_mask:
                # OOB slabs of the last grid tile contain unspecified data
                # (possibly NaN/Inf); zero via select, not a 0.0 multiply.
                valid = jnp.full((_SUBL, _LANES), i, jnp.int32) < n_valid
                zero = jnp.zeros((_SUBL, _LANES), jnp.float32)
                p = jnp.where(valid, p, zero)
                g = jnp.where(valid, g, zero)
                m = jnp.where(valid, m, zero)
            pm = p * m
            gm = g * m
            return (acc_i + pm * g, acc_p + pm, acc_g + gm)

        zeros = jnp.zeros((_SUBL, _LANES), jnp.float32)
        acc_i, acc_p, acc_g = lax.fori_loop(
            0, tb, body, (zeros, zeros, zeros), unroll=min(8, tb))

        out_ref[0, 0] = acc_i   # partial intersection = sum(p*g*m)
        out_ref[0, 1] = acc_p   # partial sum(p*m)
        out_ref[0, 2] = acc_g   # partial sum(g*m)

    return kernel


def dice_loss(prediction, gt, mask, weights=None, eps=1e-6, tb=None):
    """Pallas TPU implementation of DiceLoss.forward.

    prediction: (N, 1, H, W) or (N, H, W)
    gt:         (N, 1, H, W) or (N, H, W)
    mask:       (N, H, W)
    weights:    optional (N, H, W) — fused into the kernel (mask * weights in f32)
    Returns a scalar float32 loss.
    """
    if prediction.ndim == 4:
        prediction = prediction[:, 0, :, :]
        gt = gt[:, 0, :, :]
    assert prediction.shape == gt.shape
    assert prediction.shape == mask.shape
    has_weights = weights is not None
    if has_weights:
        assert weights.shape == mask.shape

    total = prediction.size
    n_slabs = pl.cdiv(total, _NATIVE)
    padded_total = n_slabs * _NATIVE

    def prep(x):
        x = x.reshape(-1)
        if padded_total != total:
            # Fallback copy only when the element count is not a multiple of
            # 1024; the common-case reshape below is copy-free metadata.
            x = jnp.pad(x, (0, padded_total - total))
        return x.reshape(n_slabs, _SUBL, _LANES)

    inputs = [prep(prediction), prep(gt), prep(mask)]
    if has_weights:
        inputs.append(prep(weights))

    # Tile size: fill ~_BLOCK_BYTE_BUDGET of double-buffered input blocks,
    # capped at 1024 slabs (4 MiB f32 per input) for v7x VMEM headroom.
    bytes_per_slab = sum(_NATIVE * x.dtype.itemsize for x in inputs)
    if tb is None:
        tb = max(8, _BLOCK_BYTE_BUDGET // (2 * bytes_per_slab))
        tb = min(tb, _MAX_TB)
    tb = min(tb, n_slabs)
    num_tiles = pl.cdiv(n_slabs, tb)
    needs_mask = (n_slabs % tb) != 0

    in_spec = pl.BlockSpec((tb, _SUBL, _LANES), lambda t: (t, 0, 0))
    out_spec = pl.BlockSpec((1, 3, _SUBL, _LANES), lambda t: (t, 0, 0, 0))

    flops_per_elem = 7 if has_weights else 6
    cost = pl.CostEstimate(
        flops=flops_per_elem * padded_total,
        transcendentals=0,
        bytes_accessed=sum(int(x.size) * x.dtype.itemsize for x in inputs)
        + num_tiles * 3 * _NATIVE * 4,
    )

    # Explicit scoped-VMEM budget: covers v5e's 16 MiB default and stays well
    # under v7x's 64 MiB physical VMEM (~32 MiB at the largest config here).
    vmem_limit = int(2 * tb * bytes_per_slab + 2 * 3 * _NATIVE * 4 + (8 << 20))
    vmem_limit = max(vmem_limit, 32 << 20)

    kernel = _make_dice_kernel(tb, n_slabs, has_weights, needs_mask)

    partials = pl.pallas_call(
        kernel,
        grid=(num_tiles,),
        in_specs=[in_spec] * len(inputs),
        out_specs=out_spec,
        out_shape=jax.ShapeDtypeStruct((num_tiles, 3, _SUBL, _LANES),
                                       jnp.float32),
        compiler_params=pltpu.CompilerParams(
            dimension_semantics=("parallel",),
            vmem_limit_bytes=vmem_limit),
        cost_estimate=cost,
    )(*inputs)

    sums = jnp.sum(partials, axis=(0, 2, 3))   # (3,) tiny final reduction
    intersection = sums[0]
    union = sums[1] + sums[2] + eps
    loss = 1.0 - 2.0 * intersection / union
    # TODO(synk): the host-side data-dependent `assert loss <= 1` from the
    # PyTorch module has no clean in-kernel equivalent and is omitted.
    return loss


def _dice_loss_ref(prediction, gt, mask, weights=None, eps=1e-6):
    if prediction.ndim == 4:
        prediction = prediction[:, 0, :, :]
        gt = gt[:, 0, :, :]
    prediction = prediction.astype(jnp.float32)
    gt = gt.astype(jnp.float32)
    mask = mask.astype(jnp.float32)
    if weights is not None:
        mask = mask * weights.astype(jnp.float32)
    intersection = jnp.sum(prediction * gt * mask)
    union = jnp.sum(prediction * mask) + jnp.sum(gt * mask) + eps
    return 1.0 - 2.0 * intersection / union


if __name__ == "__main__":
    key = jax.random.PRNGKey(0)
    k1, k2, k3, k4 = jax.random.split(key, 4)

    # Test 1: (N,1,H,W) inputs, element count NOT a multiple of 1024
    # (exercises the pad-fallback path), no weights.
    N, H, W = 2, 16, 16
    pred1 = jax.nn.sigmoid(jax.random.normal(k1, (N, 1, H, W), jnp.float32))
    gt1 = (jax.random.uniform(k2, (N, 1, H, W)) < 0.3).astype(jnp.float32)
    mask1 = (jax.random.uniform(k3, (N, H, W)) < 0.8).astype(jnp.float32)

    out1 = dice_loss(pred1, gt1, mask1)
    jax.block_until_ready(out1)
    ref1 = _dice_loss_ref(pred1, gt1, mask1)
    assert jnp.allclose(out1, ref1, rtol=1e-4, atol=1e-5), (out1, ref1)

    # Test 2: copy-free path (3*32*32 = 3072 = 3 slabs), mixed narrow dtypes
    # upcast in-kernel, fused weights, and a forced small tile (tb=2) so the
    # last grid tile is ragged and exercises the in-kernel mask.
    N, H, W = 3, 32, 32
    pred2 = jax.nn.sigmoid(jax.random.normal(k4, (N, 1, H, W), jnp.float32))
    gt2 = (jax.random.uniform(k2, (N, 1, H, W)) < 0.4).astype(jnp.bfloat16)
    mask2 = (jax.random.uniform(k3, (N, H, W)) < 0.7).astype(jnp.bfloat16)
    w2 = jax.random.uniform(k1, (N, H, W), jnp.float32) + 0.5

    out2 = dice_loss(pred2, gt2, mask2, weights=w2, tb=2)
    jax.block_until_ready(out2)
    ref2 = _dice_loss_ref(pred2, gt2, mask2, weights=w2)
    assert jnp.allclose(out2, ref2, rtol=1e-4, atol=1e-5), (out2, ref2)

    print("KERNEL_OK")
</pallas_src>

<mosaic_0001>
module attributes {stable_mosaic.version = 11 : i64} {
  func.func @kernel(%arg0: i32, %arg1: memref<1x8x128xf32, #tpu.memory_space<vmem>>, %arg2: memref<1x8x128xf32, #tpu.memory_space<vmem>>, %arg3: memref<1x8x128xf32, #tpu.memory_space<vmem>>, %arg4: memref<1x3x8x128xf32, #tpu.memory_space<vmem>>) attributes {dimension_semantics = [#tpu.dimension_semantics<parallel>], iteration_bounds = array<i64: 1>, scalar_prefetch = 0 : i64, scratch_operands = 0 : i64, tpu.core_type = #tpu.core_type<tc>, window_params = [{transform_indices = @transform_0, window_bounds = array<i64: 1, 8, 128>}, {transform_indices = @transform_1, window_bounds = array<i64: 1, 8, 128>}, {transform_indices = @transform_2, window_bounds = array<i64: 1, 8, 128>}, {transform_indices = @transform_3, window_bounds = array<i64: 1, 3, 8, 128>}]} {
    %cst = arith.constant 0.000000e+00 : f32
    %0 = vector.broadcast %cst : f32 to vector<8x128xf32>
    %c0_i32 = arith.constant 0 : i32
    %1 = arith.index_cast %c0_i32 : i32 to index
    %c0 = arith.constant 0 : index
    %c0_0 = arith.constant 0 : index
    %2 = vector.load %arg1[%1, %c0, %c0_0] : memref<1x8x128xf32, #tpu.memory_space<vmem>>, vector<1x8x128xf32>
    %3 = vector.shape_cast %2 : vector<1x8x128xf32> to vector<8x128xf32>
    %4 = arith.index_cast %c0_i32 : i32 to index
    %c0_1 = arith.constant 0 : index
    %c0_2 = arith.constant 0 : index
    %5 = vector.load %arg2[%4, %c0_1, %c0_2] : memref<1x8x128xf32, #tpu.memory_space<vmem>>, vector<1x8x128xf32>
    %6 = vector.shape_cast %5 : vector<1x8x128xf32> to vector<8x128xf32>
    %7 = arith.index_cast %c0_i32 : i32 to index
    %c0_3 = arith.constant 0 : index
    %c0_4 = arith.constant 0 : index
    %8 = vector.load %arg3[%7, %c0_3, %c0_4] : memref<1x8x128xf32, #tpu.memory_space<vmem>>, vector<1x8x128xf32>
    %9 = vector.shape_cast %8 : vector<1x8x128xf32> to vector<8x128xf32>
    %10 = arith.mulf %3, %9 : vector<8x128xf32>
    %11 = arith.mulf %6, %9 : vector<8x128xf32>
    %12 = arith.mulf %10, %6 : vector<8x128xf32>
    %13 = arith.addf %0, %12 : vector<8x128xf32>
    %14 = arith.addf %0, %10 : vector<8x128xf32>
    %15 = arith.addf %0, %11 : vector<8x128xf32>
    %c1_i32 = arith.constant 1 : i32
    %c0_5 = arith.constant 0 : index
    %c0_6 = arith.constant 0 : index
    %c0_7 = arith.constant 0 : index
    %c0_8 = arith.constant 0 : index
    %16 = vector.load %arg4[%c0_5, %c0_6, %c0_7, %c0_8] : memref<1x3x8x128xf32, #tpu.memory_space<vmem>>, vector<1x1x8x128xf32>
    %17 = vector.shape_cast %16 : vector<1x1x8x128xf32> to vector<8x128xf32>
    %18 = vector.shape_cast %13 : vector<8x128xf32> to vector<1x1x8x128xf32>
    tpu.vector_store %arg4[%c0_5, %c0_6, %c0_7, %c0_8], %18 {strides = array<i32>} : memref<1x3x8x128xf32, #tpu.memory_space<vmem>>, vector<1x1x8x128xf32>,
    %c0_9 = arith.constant 0 : index
    %c1 = arith.constant 1 : index
    %c0_10 = arith.constant 0 : index
    %c0_11 = arith.constant 0 : index
    %19 = vector.load %arg4[%c0_9, %c1, %c0_10, %c0_11] : memref<1x3x8x128xf32, #tpu.memory_space<vmem>>, vector<1x1x8x128xf32>
    %20 = vector.shape_cast %19 : vector<1x1x8x128xf32> to vector<8x128xf32>
    %21 = vector.shape_cast %14 : vector<8x128xf32> to vector<1x1x8x128xf32>
    tpu.vector_store %arg4[%c0_9, %c1, %c0_10, %c0_11], %21 {strides = array<i32>} : memref<1x3x8x128xf32, #tpu.memory_space<vmem>>, vector<1x1x8x128xf32>,
    %c0_12 = arith.constant 0 : index
    %c2 = arith.constant 2 : index
    %c0_13 = arith.constant 0 : index
    %c0_14 = arith.constant 0 : index
    %22 = vector.load %arg4[%c0_12, %c2, %c0_13, %c0_14] : memref<1x3x8x128xf32, #tpu.memory_space<vmem>>, vector<1x1x8x128xf32>
    %23 = vector.shape_cast %22 : vector<1x1x8x128xf32> to vector<8x128xf32>
    %24 = vector.shape_cast %15 : vector<8x128xf32> to vector<1x1x8x128xf32>
    tpu.vector_store %arg4[%c0_12, %c2, %c0_13, %c0_14], %24 {strides = array<i32>} : memref<1x3x8x128xf32, #tpu.memory_space<vmem>>, vector<1x1x8x128xf32>,
    return
  }
  func.func @transform_0(%arg0: i32) -> (i32, i32, i32) {
    %c0_i32 = arith.constant 0 : i32
    %c0_i32_0 = arith.constant 0 : i32
    %c0_i32_1 = arith.constant 0 : i32
    return %arg0, %c0_i32, %c0_i32_0 : i32, i32, i32
  }
  func.func @transform_1(%arg0: i32) -> (i32, i32, i32) {
    %c0_i32 = arith.constant 0 : i32
    %c0_i32_0 = arith.constant 0 : i32
    %c0_i32_1 = arith.constant 0 : i32
    return %arg0, %c0_i32, %c0_i32_0 : i32, i32, i32
  }
  func.func @transform_2(%arg0: i32) -> (i32, i32, i32) {
    %c0_i32 = arith.constant 0 : i32
    %c0_i32_0 = arith.constant 0 : i32
    %c0_i32_1 = arith.constant 0 : i32
    return %arg0, %c0_i32, %c0_i32_0 : i32, i32, i32
  }
  func.func @transform_3(%arg0: i32) -> (i32, i32, i32, i32) {
    %c0_i32 = arith.constant 0 : i32
    %c0_i32_0 = arith.constant 0 : i32
    %c0_i32_1 = arith.constant 0 : i32
    %c0_i32_2 = arith.constant 0 : i32
    return %arg0, %c0_i32, %c0_i32_0, %c0_i32_1 : i32, i32, i32, i32
  }
}

</mosaic_0001>

<llo_original>
// kernel: tpu_custom_call.1
$region0: #{tpu_custom_call.1}
  #allocation0 [shape = 'u32[]', space=smem, size = 0x4, offset = 0x4, fixed_abs, tag = 'smem constant byte address 0x4 - core index']
  #allocation1 [shape = 'u32[72,128]{1,0:T(1,128)}', space=vmem, size = 0x9000, scoped, tag = 'internal scratch']
  %s0 = inlined_call_operand.hbm [shape: f32[1,8,128], index: 0, kind: input, shape index: {}]
  %s1 = inlined_call_operand.hbm [shape: f32[1,8,128], index: 1, kind: input, shape index: {}]
  %s2 = inlined_call_operand.hbm [shape: f32[1,8,128], index: 2, kind: input, shape index: {}]
  %s3 = inlined_call_operand.hbm [shape: f32[1,3,8,128], index: 3, kind: output, shape index: {}]
  %s4 = sld [smem:[#allocation0]]
  $region34: #{tpu_custom_call.1} parent=0
    _
  %s6 = ssub.s32 1, %s4
  %s7 = scalar_select 0, %s6, %s4
  $region1: #{tpu_custom_call.1} parent=0
    #allocation2 [shape = 'u8[4096]{0}', space=vmem, size = 0x1000, scoped, tag = 'input window, operand 0, single buffered']
    #allocation3 [shape = 's32[1]{0}', space=sflag, size = 0x4, scoped, tag = 'scoped memory for tpu_custom_call.1']
    #allocation4 [shape = 's32[1]{0}', space=sflag, size = 0x4, scoped, tag = 'scoped memory for tpu_custom_call.1']
    #allocation5 [shape = 'u8[4096]{0}', space=vmem, size = 0x1000, scoped, tag = 'input window, operand 1, single buffered']
    #allocation6 [shape = 's32[1]{0}', space=sflag, size = 0x4, scoped, tag = 'scoped memory for tpu_custom_call.1']
    #allocation7 [shape = 'u8[4096]{0}', space=vmem, size = 0x1000, scoped, tag = 'input window, operand 2, single buffered']
    #allocation8 [shape = 'u8[12288]{0}', space=vmem, size = 0x3000, scoped, tag = 'output window, operand 0, single buffered']
    %8 = vsyncpa [#allocation3], 0
    %9 = vsyncpa [#allocation6], 0
    %10 = vsyncpa [#allocation4], 0
    // Predicated region
    $region2: #{tpu_custom_call.1} parent=1 // pred_check
      _
    $region3: #{tpu_custom_call.1} parent=1 // pred_check_branch
      %12 = sbr.rel (0) target = $region5
    $region4: #{tpu_custom_call.1} parent=1 // pred_region
      %14 = vsyncadd [#allocation3], 0
      %s16 = sshll.u32 %s0, 4
      %s17 = int_to_ptr.hbm [resolvable:$true] %s16
      %s18 = sshll.u32 [#allocation2], 4
      %s19 = int_to_ptr.vmem [resolvable:$true] %s18
      %21 = dma.hbm_to_vmem [thread:$0]  %s17, 128, %s19, [#allocation3]
    $region5: #{tpu_custom_call.1} parent=1 // pred_fallthru
      _
    // Predicated region
    $region6: #{tpu_custom_call.1} parent=1 // pred_check
      _
    $region7: #{tpu_custom_call.1} parent=1 // pred_check_branch
      %23 = sbr.rel (0) target = $region9
    $region8: #{tpu_custom_call.1} parent=1 // pred_region
      %25 = vsyncadd [#allocation6], 0
      %s27 = sshll.u32 %s1, 4
      %s28 = int_to_ptr.hbm [resolvable:$true] %s27
      %s29 = sshll.u32 [#allocation5], 4
      %s30 = int_to_ptr.vmem [resolvable:$true] %s29
      %32 = dma.hbm_to_vmem [thread:$0]  %s28, 128, %s30, [#allocation6]
    $region9: #{tpu_custom_call.1} parent=1 // pred_fallthru
      _
    // Predicated region
    $region10: #{tpu_custom_call.1} parent=1 // pred_check
      _
    $region11: #{tpu_custom_call.1} parent=1 // pred_check_branch
      %34 = sbr.rel (0) target = $region13
    $region12: #{tpu_custom_call.1} parent=1 // pred_region
      %36 = vsyncadd [#allocation6], 0
      %s38 = sshll.u32 %s2, 4
      %s39 = int_to_ptr.hbm [resolvable:$true] %s38
      %s40 = sshll.u32 [#allocation7], 4
      %s41 = int_to_ptr.vmem [resolvable:$true] %s40
      %43 = dma.hbm_to_vmem [thread:$0]  %s39, 128, %s41, [#allocation6]
    $region13: #{tpu_custom_call.1} parent=1 // pred_fallthru
      _
    // Predicated region
    $region14: #{tpu_custom_call.1} parent=1 // pred_check
      _
    $region15: #{tpu_custom_call.1} parent=1 // pred_check_branch
      %45 = sbr.rel (0) target = $region17
    $region16: #{tpu_custom_call.1} parent=1 // pred_region
      %47 = dma.done [#allocation3], 128
    $region17: #{tpu_custom_call.1} parent=1 // pred_fallthru
      _
    // Predicated region
    $region18: #{tpu_custom_call.1} parent=1 // pred_check
      _
    $region19: #{tpu_custom_call.1} parent=1 // pred_check_branch
      %49 = sbr.rel (0) target = $region21
    $region20: #{tpu_custom_call.1} parent=1 // pred_region
      %51 = dma.done [#allocation6], 128
    $region21: #{tpu_custom_call.1} parent=1 // pred_fallthru
      _
    // Predicated region
    $region22: #{tpu_custom_call.1} parent=1 // pred_check
      _
    $region23: #{tpu_custom_call.1} parent=1 // pred_check_branch
      %53 = sbr.rel (0) target = $region25
    $region24: #{tpu_custom_call.1} parent=1 // pred_region
      %55 = dma.done [#allocation6], 128
    $region25: #{tpu_custom_call.1} parent=1 // pred_fallthru
      _
    %v56 = vld [vmem:[#allocation2] sm:$0xff]
    %v57 = vld [vmem:[#allocation5] sm:$0xff]
    %v58 = vld [vmem:[#allocation7] sm:$0xff]
    %v59 = vmul.f32 %v56, %v58
    %v60 = vmul.f32 %v57, %v58
    %v61 = vmul.f32 %v59, %v57
    %v62 = vadd.f32 %v61, 0.0
    %v63 = vadd.f32 %v59, 0.0
    %v64 = vadd.f32 %v60, 0.0
    %65 = vst [vmem:[#allocation8] sm:$0xff] %v62
    %s66 = scalar_lea.vmem [#allocation8], 8
    %67 = vst [vmem:[%s66] sm:$0xff] %v63
    %s68 = scalar_lea.vmem [#allocation8], 16
    %69 = vst [vmem:[%s68] sm:$0xff] %v64
    // Predicated region
    $region26: #{tpu_custom_call.1} parent=1 // pred_check
      _
    $region27: #{tpu_custom_call.1} parent=1 // pred_check_branch
      %71 = sbr.rel (0) target = $region29
    $region28: #{tpu_custom_call.1} parent=1 // pred_region
      %73 = vsyncadd [#allocation4], 0
      %s74 = sshll.u32 [#allocation8], 4
      %s75 = int_to_ptr.vmem [resolvable:$true] %s74
      %s76 = sshll.u32 %s3, 4
      %s77 = int_to_ptr.hbm [resolvable:$true] %s76
      %82 = dma.vmem_to_hbm [thread:$0]  %s75, 384, %s77, [#allocation4], 128, 128, 8
    $region29: #{tpu_custom_call.1} parent=1 // pred_fallthru
      _
    // Predicated region
    $region30: #{tpu_custom_call.1} parent=1 // pred_check
      _
    $region31: #{tpu_custom_call.1} parent=1 // pred_check_branch
      %84 = sbr.rel (0) target = $region33
    $region32: #{tpu_custom_call.1} parent=1 // pred_region
      %86 = dma.done [#allocation4], 384
    $region33: #{tpu_custom_call.1} parent=1 // pred_fallthru
      _
    %87 = vsyncpa [#allocation3], 1
    %88 = vsyncpa [#allocation6], 1
    %89 = vsyncpa [#allocation4], 1

</llo_original>
